<compile_context>
chip_gen: v6e
topology: v6e:2x2x1
jax: 0.10.0
libtpu: 0.0.40
codegen_flags: <defaults>
</compile_context>

<pallas_src>
import math

import jax
import jax.numpy as jnp
from jax.experimental import pallas as pl
from jax.experimental.pallas import tpu as pltpu


def diffconv_kernel(a_ref, p_ref, s_ref, o_ref):
    """One (row_tile, graph, k_tile) step: o += rowscale_g * (M_g_tile @ P_g_tile)."""
    g = pl.program_id(1)   # graph index        (reduction axis)
    k = pl.program_id(2)   # contraction tile   (reduction axis, innermost)

    @pl.when((g == 0) & (k == 0))
    def _():
        o_ref[...] = jnp.zeros_like(o_ref)

    # int8 -> bf16 is exact (|q| <= 127); MXU runs bf16 x bf16 with f32 accumulate.
    a = a_ref[0].astype(jnp.bfloat16)                         # (tn, tk)
    feat = jnp.dot(a, p_ref[0], preferred_element_type=jnp.float32)   # (tn, F_out)
    # s_ref[0] is (tn, 1): per-row dequant scale * merger[g] / (G+1).  VPU slack.
    o_ref[...] += s_ref[0] * feat


def _round_up(x, m):
    return (x + m - 1) // m * m


def _pick_tiles(n, row_tile, k_tile):
    """128-aligned row/contraction tiles; n_pad divisible by both."""
    n128 = _round_up(n, 128)
    if row_tile is not None or k_tile is not None:
        tn = min(n128, _round_up(min(row_tile or 512, n128), 128))
        tk = min(n128, _round_up(min(k_tile or 1024, n128), 128))
        return tn, tk, _round_up(n, math.lcm(tn, tk))
    if n128 <= 1024:                      # small graphs: single tile both ways
        return n128, n128, n128
    return 512, 1024, _round_up(n, 1024)  # fixed tiles independent of N


def _quantize_rows_int8(adjs):
    """Symmetric per-row int8 quantization of the message-passing matrices."""
    adjs = adjs.astype(jnp.float32)
    row_max = jnp.max(jnp.abs(adjs), axis=-1, keepdims=True)           # [G, N, 1]
    scale = jnp.maximum(row_max, 1e-30) / 127.0
    q = jnp.clip(jnp.round(adjs / scale), -127.0, 127.0).astype(jnp.int8)
    return q, scale


def diffconv_forward(x, weights, adjs, merger, *,
                     adj_dtype=jnp.int8, row_tile=None, k_tile=None):
    """x:[N,F_in], weights:[G,F_in,F_out], adjs:[G,N,N] (dense M_g), merger:[G+1]."""
    n, f_in = x.shape
    g, f_in2, f_out = weights.shape
    assert f_in2 == f_in
    assert adjs.shape == (g, n, n)
    assert merger.shape == (g + 1,)

    merger = merger.astype(jnp.float32)
    inv_terms = jnp.float32(1.0 / (g + 1))

    # Projection hoisted out of the reduction loop (tiny F_in contraction; XLA einsum).
    p_f32 = jnp.einsum('nk,gkf->gnf', x.astype(jnp.float32),
                       weights.astype(jnp.float32))                    # [G, N, F_out]
    p_bf = p_f32.astype(jnp.bfloat16)

    # Compress the dominant G*N^2 adjacency stream.  (For static graphs this
    # quantization would be precomputed once outside the step function.)
    if adj_dtype == jnp.int8:
        a_q, scale = _quantize_rows_int8(adjs)
        row_scale = scale[..., 0]                                      # [G, N]
    else:
        a_q = adjs.astype(adj_dtype)
        row_scale = jnp.ones((g, n), jnp.float32)

    # Fold merger[g]/(G+1) into the per-row scale applied in-kernel.
    srow = row_scale * (merger[:g, None] * inv_terms)                  # [G, N]

    tn, tk, n_pad = _pick_tiles(n, row_tile, k_tile)
    assert n_pad % tn == 0 and n_pad % tk == 0
    pad = n_pad - n
    if pad:
        a_q = jnp.pad(a_q, ((0, 0), (0, pad), (0, pad)))
        p_bf = jnp.pad(p_bf, ((0, 0), (0, pad), (0, 0)))
        srow = jnp.pad(srow, ((0, 0), (0, pad)))
    srow = srow[..., None]                                             # [G, n_pad, 1]

    grid = (n_pad // tn, g, n_pad // tk)

    out = pl.pallas_call(
        diffconv_kernel,
        grid_spec=pltpu.PrefetchScalarGridSpec(
            num_scalar_prefetch=0,
            grid=grid,
            in_specs=[
                pl.BlockSpec((1, tn, tk), lambda i, gg, kk: (gg, i, kk)),     # M_g tile
                pl.BlockSpec((1, tk, f_out), lambda i, gg, kk: (gg, kk, 0)),  # P_g tile
                pl.BlockSpec((1, tn, 1), lambda i, gg, kk: (gg, i, 0)),       # row scales
            ],
            out_specs=pl.BlockSpec((tn, f_out), lambda i, gg, kk: (i, 0)),    # resident acc
        ),
        out_shape=jax.ShapeDtypeStruct((n_pad, f_out), jnp.float32),
        compiler_params=pltpu.CompilerParams(
            dimension_semantics=("parallel", "arbitrary", "arbitrary")),
    )(a_q, p_bf, srow)

    # Skip term: feat_list.append(project_fcs[-1](x)) == x @ W_{G-1}, kept in f32
    # and added in the wrapper (O(N*F_out), negligible vs the G*N^2 stream).
    skip = p_f32[g - 1] * (merger[g] * inv_terms)
    return (out[:n] + skip).astype(x.dtype)


# ----------------------------- references ---------------------------------

def diffconv_ref(x, weights, adjs, merger):
    """Pure-JAX f32 reference of the PyTorch module (dense message passing)."""
    g = weights.shape[0]
    p = jnp.einsum('nk,gkf->gnf', x, weights)
    feats = [adjs[i] @ p[i] for i in range(g)] + [p[g - 1]]
    feats = jnp.stack(feats)                                           # [G+1, N, F_out]
    return (merger[:, None, None] * feats).mean(0)


def diffconv_ref_quant(x, weights, adjs, merger, adj_dtype=jnp.int8):
    """Reference that mirrors the kernel's adjacency/projection compression."""
    g = weights.shape[0]
    p = jnp.einsum('nk,gkf->gnf', x, weights)
    p_lp = p.astype(jnp.bfloat16).astype(jnp.float32)
    if adj_dtype == jnp.int8:
        q, scale = _quantize_rows_int8(adjs)
        a = q.astype(jnp.float32) * scale
    else:
        a = adjs.astype(adj_dtype).astype(jnp.float32)
    total = sum(merger[i] * (a[i] @ p_lp[i]) for i in range(g)) + merger[g] * p[g - 1]
    return total / (g + 1)


def _make_dense_graphs(key, n, num_graphs, k_steps):
    # TODO(synk): DGL/scipy sparse graph construction (attach_graph/diffuse) has no
    # Pallas equivalent; graphs are represented as dense message-passing matrices.
    wadj = jax.random.uniform(key, (n, n), dtype=jnp.float32) + 0.1
    ind = wadj.sum(axis=0)
    p_in = wadj.T / ind[:, None]                    # normalized transition matrix
    diffusion = [p_in]
    for _ in range(max(k_steps, num_graphs) - 1):
        diffusion.append(diffusion[-1] @ p_in)
    # message passing feat[v] = sum_u n[u] * w(u->v)  ->  M = adj^T
    return jnp.stack([m.T for m in diffusion[:num_graphs]]).astype(jnp.float32)


if __name__ == "__main__":
    key = jax.random.PRNGKey(0)
    k_x, k_w, k_m, k_a, k_x2, k_w2, k_m2, k_a2 = jax.random.split(key, 8)

    in_feats, out_feats, k_steps = 8, 32, 3

    # ---- test 1: dir='both', k=3 -> num_graphs = k - 1 = 2; tiny N exercises the
    #      single-tile path (N padded to 128) with int8 adjacency.
    n1 = 16
    g1 = k_steps - 1
    x1 = jax.random.normal(k_x, (n1, in_feats), dtype=jnp.float32)
    w1 = jax.random.normal(k_w, (g1, in_feats, out_feats), dtype=jnp.float32) / jnp.sqrt(
        jnp.float32(in_feats))
    m1 = jax.random.normal(k_m, (g1 + 1,), dtype=jnp.float32)
    a1 = _make_dense_graphs(k_a, n1, g1, k_steps)

    out1 = jax.block_until_ready(diffconv_forward(x1, w1, a1, m1))
    assert out1.shape == (n1, out_feats)
    assert jnp.allclose(out1, diffconv_ref_quant(x1, w1, a1, m1), atol=2e-3, rtol=2e-3), \
        "mismatch vs quantized reference (t1)"
    assert jnp.allclose(out1, diffconv_ref(x1, w1, a1, m1), atol=5e-2, rtol=5e-2), \
        "mismatch vs f32 reference (t1)"

    # bf16 adjacency fallback path.
    out1b = jax.block_until_ready(diffconv_forward(x1, w1, a1, m1, adj_dtype=jnp.bfloat16))
    assert jnp.allclose(out1b, diffconv_ref_quant(x1, w1, a1, m1, jnp.bfloat16),
                        atol=2e-3, rtol=2e-3), "mismatch vs bf16 reference (t1b)"
    assert jnp.allclose(out1b, diffconv_ref(x1, w1, a1, m1), atol=5e-2, rtol=5e-2), \
        "mismatch vs f32 reference (t1b)"

    # ---- test 2: dir='in', k=3 -> num_graphs = 2*k - 2 = 4; N not a multiple of 128,
    #      exercising padding, 2 row tiles (parallel axis) and 2 contraction tiles.
    n2 = 200
    g2 = 2 * k_steps - 2
    x2 = jax.random.normal(k_x2, (n2, in_feats), dtype=jnp.float32)
    w2 = jax.random.normal(k_w2, (g2, in_feats, out_feats), dtype=jnp.float32) / jnp.sqrt(
        jnp.float32(in_feats))
    m2 = jax.random.normal(k_m2, (g2 + 1,), dtype=jnp.float32)
    a2 = _make_dense_graphs(k_a2, n2, g2, k_steps)

    out2 = jax.block_until_ready(
        diffconv_forward(x2, w2, a2, m2, row_tile=128, k_tile=128))
    assert out2.shape == (n2, out_feats)
    assert jnp.allclose(out2, diffconv_ref_quant(x2, w2, a2, m2), atol=2e-3, rtol=2e-3), \
        "mismatch vs quantized reference (t2)"
    assert jnp.allclose(out2, diffconv_ref(x2, w2, a2, m2), atol=5e-2, rtol=5e-2), \
        "mismatch vs f32 reference (t2)"

    print("KERNEL_OK")
</pallas_src>

<mosaic_0001>
module attributes {stable_mosaic.version = 11 : i64} {
  func.func @diffconv_kernel(%arg0: i32, %arg1: i32, %arg2: i32, %arg3: memref<1x128x128xi8, #tpu.memory_space<vmem>>, %arg4: memref<1x128x32xbf16, #tpu.memory_space<vmem>>, %arg5: memref<1x128x1xf32, #tpu.memory_space<vmem>>, %arg6: memref<128x32xf32, #tpu.memory_space<vmem>>) attributes {dimension_semantics = [#tpu.dimension_semantics<parallel>, #tpu.dimension_semantics<arbitrary>, #tpu.dimension_semantics<arbitrary>], iteration_bounds = array<i64: 1, 2, 1>, scalar_prefetch = 0 : i64, scratch_operands = 0 : i64, tpu.core_type = #tpu.core_type<tc>, window_params = [{transform_indices = @transform_0, window_bounds = array<i64: 1, 128, 128>}, {transform_indices = @transform_1, window_bounds = array<i64: 1, 128, 32>}, {transform_indices = @transform_2, window_bounds = array<i64: 1, 128, 1>}, {transform_indices = @transform_3, window_bounds = array<i64: 128, 32>}]} {
    %c0_i32 = arith.constant 0 : i32
    %0 = arith.cmpi eq, %arg1, %c0_i32 : i32
    %c0_i32_0 = arith.constant 0 : i32
    %1 = arith.cmpi eq, %arg2, %c0_i32_0 : i32
    %2 = arith.andi %0, %1 : i1
    %3 = arith.extui %2 : i1 to i32
    %c0_i32_1 = arith.constant 0 : i32
    %4 = arith.cmpi ne, %3, %c0_i32_1 : i32
    scf.if %4 {
      %cst_14 = arith.constant 0.000000e+00 : f32
      %18 = vector.broadcast %cst_14 : f32 to vector<128x32xf32>
      %c0_15 = arith.constant 0 : index
      %c0_16 = arith.constant 0 : index
      %19 = vector.load %arg6[%c0_15, %c0_16] : memref<128x32xf32, #tpu.memory_space<vmem>>, vector<128x32xf32>
      tpu.vector_store %arg6[%c0_15, %c0_16], %18 {strides = array<i32>} : memref<128x32xf32, #tpu.memory_space<vmem>>, vector<128x32xf32>,
    } else {
    }
    %c0 = arith.constant 0 : index
    %c0_2 = arith.constant 0 : index
    %c0_3 = arith.constant 0 : index
    %5 = vector.load %arg3[%c0, %c0_2, %c0_3] : memref<1x128x128xi8, #tpu.memory_space<vmem>>, vector<1x128x128xi8>
    %6 = vector.shape_cast %5 : vector<1x128x128xi8> to vector<128x128xi8>
    %7 = arith.sitofp %6 : vector<128x128xi8> to vector<128x128xbf16>
    %c0_4 = arith.constant 0 : index
    %c0_5 = arith.constant 0 : index
    %c0_6 = arith.constant 0 : index
    %8 = vector.load %arg4[%c0_4, %c0_5, %c0_6] : memref<1x128x32xbf16, #tpu.memory_space<vmem>>, vector<1x128x32xbf16>
    %9 = vector.shape_cast %8 : vector<1x128x32xbf16> to vector<128x32xbf16>
    %cst = arith.constant dense<0.000000e+00> : vector<128x32xf32>
    %10 = tpu.matmul %7, %9, %cst {dimension_numbers = #tpu.dot_dimension_numbers<[1], [0], [0], [1], [0, 0, 1, 1], [], []>} : vector<128x128xbf16>, vector<128x32xbf16>, vector<128x32xf32> -> vector<128x32xf32>
    %c0_7 = arith.constant 0 : index
    %c0_8 = arith.constant 0 : index
    %11 = vector.load %arg6[%c0_7, %c0_8] : memref<128x32xf32, #tpu.memory_space<vmem>>, vector<128x32xf32>
    %c0_9 = arith.constant 0 : index
    %c0_10 = arith.constant 0 : index
    %c0_11 = arith.constant 0 : index
    %12 = vector.load %arg5[%c0_9, %c0_10, %c0_11] : memref<1x128x1xf32, #tpu.memory_space<vmem>>, vector<1x128x1xf32>
    %13 = vector.shape_cast %12 : vector<1x128x1xf32> to vector<128x1xf32>
    %14 = vector.broadcast %13 : vector<128x1xf32> to vector<128x32xf32>
    %15 = arith.mulf %14, %10 : vector<128x32xf32>
    %16 = arith.addf %11, %15 : vector<128x32xf32>
    %c0_12 = arith.constant 0 : index
    %c0_13 = arith.constant 0 : index
    %17 = vector.load %arg6[%c0_12, %c0_13] : memref<128x32xf32, #tpu.memory_space<vmem>>, vector<128x32xf32>
    tpu.vector_store %arg6[%c0_12, %c0_13], %16 {strides = array<i32>} : memref<128x32xf32, #tpu.memory_space<vmem>>, vector<128x32xf32>,
    return
  }
  func.func @transform_0(%arg0: i32, %arg1: i32, %arg2: i32) -> (i32, i32, i32) {
    %c0_i32 = arith.constant 0 : i32
    return %arg1, %arg0, %arg2 : i32, i32, i32
  }
  func.func @transform_1(%arg0: i32, %arg1: i32, %arg2: i32) -> (i32, i32, i32) {
    %c0_i32 = arith.constant 0 : i32
    %c0_i32_0 = arith.constant 0 : i32
    return %arg1, %arg2, %c0_i32 : i32, i32, i32
  }
  func.func @transform_2(%arg0: i32, %arg1: i32, %arg2: i32) -> (i32, i32, i32) {
    %c0_i32 = arith.constant 0 : i32
    %c0_i32_0 = arith.constant 0 : i32
    return %arg1, %arg0, %c0_i32 : i32, i32, i32
  }
  func.func @transform_3(%arg0: i32, %arg1: i32, %arg2: i32) -> (i32, i32) {
    %c0_i32 = arith.constant 0 : i32
    %c0_i32_0 = arith.constant 0 : i32
    return %arg0, %c0_i32 : i32, i32
  }
}

</mosaic_0001>

<llo_original>
// kernel: tpu_custom_call.1
$region0: #{tpu_custom_call.1}
  #allocation0 [shape = 'u32[]', space=smem, size = 0x4, offset = 0x4, fixed_abs, tag = 'smem constant byte address 0x4 - core index']
  #allocation1 [shape = 'u32[144,128]{1,0:T(1,128)}', space=vmem, size = 0x12000, scoped, tag = 'internal scratch']
  %s0 = inlined_call_operand.vmem [shape: s8[2,128,128], index: 0, kind: input, shape index: {}]
  %s1 = inlined_call_operand.vmem [shape: bf16[2,128,32], index: 1, kind: input, shape index: {}]
  %s2 = inlined_call_operand.vmem [shape: f32[2,128,1], index: 2, kind: input, shape index: {}]
  %s3 = inlined_call_operand.vmem [shape: f32[128,32], index: 3, kind: output, shape index: {}]
  %s4 = sld [smem:[#allocation0]]
  $region49: #{tpu_custom_call.1} parent=0
    _
  %s6 = ssub.s32 1, %s4
  %s7 = scalar_select 0, %s6, %s4
  loop: start=0, step=1, limit=4
  $region2: #{tpu_custom_call.1} parent=0 // loop_pre_header
    _
  $region3: #{tpu_custom_call.1} parent=0 // loop_header
    %s9 = sphi 0, %s13
    %p10 = scmp.ge.s32.totalorder %s9, 4
    %s16 = sphi 0, %s35
    %s17 = sphi 0, %s31
    %s18 = sphi 0, %s27
    %s19 = sphi 0, %s16
    %s20 = sphi 0, %s17
    %s21 = sphi 0, %s18
    %s22 = sphi 0, %s19
    %s23 = sphi 0, %s20
    %s24 = sphi 0, %s21
    %s42 = sphi 0, %s44
    %s45 = sphi 0, %s42
    %s46 = sphi 0, %s45
    %s62 = sphi 0, %s46
    %s70 = sphi 0, %s72
    %s73 = sphi 0, %s70
    %s74 = sphi 0, %s73
    %s90 = sphi 0, %s74
    %s98 = sphi 0, %s100
    %s101 = sphi 0, %s98
    %s102 = sphi 0, %s101
    %s118 = sphi 0, %s102
    %s124 = sphi 0, %s126
    %s127 = sphi 0, %s124
    %s128 = sphi 0, %s127
    %s144 = sphi 0, %s128
  $region4: #{tpu_custom_call.1} parent=0 // loop_header_branch
    %12 = sbr.rel (%p10) target = $region8
  $region5: #{tpu_custom_call.1} parent=0 // loop_body
    %s14 = ssub.s32 %s9, 1
    %s15 = ssub.s32 %s9, 2
    %s25 = sadd.s32 1, %s18
    %p26 = scmp.ge.s32.totalorder %s25, 1
    %s27 = scalar_select %p26, 0, %s25
    %s28 = sadd.s32 1, %s17
    %s29 = scalar_select %p26, %s28, %s17
    %p30 = scmp.ge.s32.totalorder %s29, 2
    %s31 = scalar_select %p30, 0, %s29
    %s32 = sadd.s32 1, %s16
    %s33 = scalar_select %p30, %s32, %s16
    %p34 = scmp.ge.s32.totalorder %s33, 1
    %s35 = scalar_select %p34, 0, %s33
    %s36 = ssub.s32 %s17, %s31
    %s37 = ssub.s32 %s16, %s35
    %s38 = sor.u32 %s36, %s37
    %s39 = ssub.s32 %s18, %s27
    %s40 = sor.u32 %s38, %s39
    %p41 = scmp.eq.s32.totalorder %s40, 0
    %s43 = sadd.s32 %s42, 1
    %s44 = scalar_select %p41, %s42, %s43
    %p47 = pneg %p41
    %p48 = scmp.eq.s32.totalorder %s9, 1
    %p49 = por %p47, %p48
    %p50 = scmp.ne.s32.totalorder %s42, %s45
    %p51 = scmp.eq.s32.totalorder %s9, 0
    %p52 = por %p50, %p51
    %p53 = scmp.ne.s32.totalorder %s42, %s45
    %p54 = scmp.eq.s32.totalorder %s14, 1
    %p55 = por %p53, %p54
    %p56 = scmp.ne.s32.totalorder %s45, %s46
    %p57 = scmp.eq.s32.totalorder %s14, 0
    %p58 = por %p56, %p57
    %p59 = scmp.ne.s32.totalorder %s45, %s46
    %p60 = scmp.eq.s32.totalorder %s15, 1
    %p61 = por %p59, %p60
    %p63 = scmp.ne.s32.totalorder %s46, %s62
    %p64 = scmp.eq.s32.totalorder %s15, 0
    %p65 = por %p63, %p64
    %s66 = ssub.s32 %s17, %s31
    %s67 = ssub.s32 %s18, %s27
    %s68 = sor.u32 %s66, %s67
    %p69 = scmp.eq.s32.totalorder %s68, 0
    %s71 = sadd.s32 %s70, 1
    %s72 = scalar_select %p69, %s70, %s71
    %p75 = pneg %p69
    %p76 = scmp.eq.s32.totalorder %s9, 1
    %p77 = por %p75, %p76
    %p78 = scmp.ne.s32.totalorder %s70, %s73
    %p79 = scmp.eq.s32.totalorder %s9, 0
    %p80 = por %p78, %p79
    %p81 = scmp.ne.s32.totalorder %s70, %s73
    %p82 = scmp.eq.s32.totalorder %s14, 1
    %p83 = por %p81, %p82
    %p84 = scmp.ne.s32.totalorder %s73, %s74
    %p85 = scmp.eq.s32.totalorder %s14, 0
    %p86 = por %p84, %p85
    %p87 = scmp.ne.s32.totalorder %s73, %s74
    %p88 = scmp.eq.s32.totalorder %s15, 1
    %p89 = por %p87, %p88
    %p91 = scmp.ne.s32.totalorder %s74, %s90
    %p92 = scmp.eq.s32.totalorder %s15, 0
    %p93 = por %p91, %p92
    %s94 = ssub.s32 %s17, %s31
    %s95 = ssub.s32 %s16, %s35
    %s96 = sor.u32 %s94, %s95
    %p97 = scmp.eq.s32.totalorder %s96, 0
    %s99 = sadd.s32 %s98, 1
    %s100 = scalar_select %p97, %s98, %s99
    %p103 = pneg %p97
    %p104 = scmp.eq.s32.totalorder %s9, 1
    %p105 = por %p103, %p104
    %p106 = scmp.ne.s32.totalorder %s98, %s101
    %p107 = scmp.eq.s32.totalorder %s9, 0
    %p108 = por %p106, %p107
    %p109 = scmp.ne.s32.totalorder %s98, %s101
    %p110 = scmp.eq.s32.totalorder %s14, 1
    %p111 = por %p109, %p110
    %p112 = scmp.ne.s32.totalorder %s101, %s102
    %p113 = scmp.eq.s32.totalorder %s14, 0
    %p114 = por %p112, %p113
    %p115 = scmp.ne.s32.totalorder %s101, %s102
    %p116 = scmp.eq.s32.totalorder %s15, 1
    %p117 = por %p115, %p116
    %p119 = scmp.ne.s32.totalorder %s102, %s118
    %p120 = scmp.eq.s32.totalorder %s15, 0
    %p121 = por %p119, %p120
    %s122 = ssub.s32 %s16, %s35
    %p123 = scmp.eq.s32.totalorder %s122, 0
    %s125 = sadd.s32 %s124, 1
    %s126 = scalar_select %p123, %s124, %s125
    %p129 = pneg %p123
    %p130 = scmp.eq.s32.totalorder %s9, 1
    %p131 = por %p129, %p130
    %p132 = scmp.ne.s32.totalorder %s124, %s127
    %p133 = scmp.eq.s32.totalorder %s9, 0
    %p134 = por %p132, %p133
    %p135 = scmp.ne.s32.totalorder %s124, %s127
    %p136 = scmp.eq.s32.totalorder %s14, 1
    %p137 = por %p135, %p136
    %p138 = scmp.ne.s32.totalorder %s127, %s128
    %p139 = scmp.eq.s32.totalorder %s14, 0
    %p140 = por %p138, %p139
    %p141 = scmp.ne.s32.totalorder %s127, %s128
    %p142 = scmp.eq.s32.totalorder %s15, 1
    %p143 = por %p141, %p142
    %p145 = scmp.ne.s32.totalorder %s128, %s144
    %p146 = scmp.eq.s32.totalorder %s15, 0
    %p147 = por %p145, %p146
    %p148 = scmp.le.s32.totalorder 1, %s9
    %p149 = scmp.lt.s32.totalorder %s9, 3
    %p150 = pnand %p148, %p149
    %p151 = pneg %p150
    // Predicated region
    $region9: #{tpu_custom_call.1} parent=5 // pred_check
      _
    $region10: #{tpu_custom_call.1} parent=5 // pred_check_branch
      %153 = sbr.rel (%p150) target = $region12
    $region11: #{tpu_custom_call.1} parent=5 // pred_region
      %s154 = ssub.s32 %s9, 1
    $region12: #{tpu_custom_call.1} parent=5 // pred_fallthru
      _
    %p155 = scmp.lt.s32.totalorder %s9, 2
    // Predicated region
    $region13: #{tpu_custom_call.1} parent=5 // pred_check
      %p156 = pneg %p155
    $region14: #{tpu_custom_call.1} parent=5 // pred_check_branch
      %158 = sbr.rel (%p156) target = $region16
    $region15: #{tpu_custom_call.1} parent=5 // pred_region
      // Predicated region
      $region17: #{tpu_custom_call.1} parent=15 // pred_check
        %p159 = pneg %p52
      $region18: #{tpu_custom_call.1} parent=15 // pred_check_branch
        %161 = sbr.rel (%p159) target = $region20
      $region19: #{tpu_custom_call.1} parent=15 // pred_region
        %s162 = smul.u32 4, %s16
        %p163 = scmp.lt.s32.totalorder %s17, 1
        %s164 = scalar_select %p163, %s17, 1
        %p165 = scmp.lt.s32.totalorder %s162, 3
        %s166 = scalar_select %p165, %s162, 3
        %p167 = scmp.lt.s32.totalorder %s18, 0
        %s168 = scalar_select %p167, %s18, 0
        %s169 = sadd.s32 %s168, %s166
        %s170 = smul.addr %s164, 4
        %s171 = sadd.s32 %s169, %s170
        %s172 = smul.addr %s171, 8
        %s173 = scalar_lea.vmem %s0, %s172
        %s174 = smul.u32 4, %s16
      $region20: #{tpu_custom_call.1} parent=15 // pred_fallthru
        _
      // Predicated region
      $region21: #{tpu_custom_call.1} parent=15 // pred_check
        %p175 = pneg %p80
      $region22: #{tpu_custom_call.1} parent=15 // pred_check_branch
        %177 = sbr.rel (%p175) target = $region24
      $region23: #{tpu_custom_call.1} parent=15 // pred_region
        %s178 = smul.u32 16, %s18
        %p179 = scmp.lt.s32.totalorder %s17, 1
        %s180 = scalar_select %p179, %s17, 1
        %p181 = scmp.lt.s32.totalorder %s178, 15
        %s182 = scalar_select %p181, %s178, 15
        %s183 = smul.addr %s180, 16
        %s184 = sadd.s32 %s182, %s183
        %s185 = smul.addr %s184, 4
        %s186 = scalar_lea.vmem %s1, %s185
        %s187 = smul.u32 16, %s18
      $region24: #{tpu_custom_call.1} parent=15 // pred_fallthru
        _
      // Predicated region
      $region25: #{tpu_custom_call.1} parent=15 // pred_check
        %p188 = pneg %p108
      $region26: #{tpu_custom_call.1} parent=15 // pred_check_branch
        %190 = sbr.rel (%p188) target = $region28
      $region27: #{tpu_custom_call.1} parent=15 // pred_region
        %s191 = smul.u32 16, %s16
        %p192 = scmp.lt.s32.totalorder %s17, 1
        %s193 = scalar_select %p192, %s17, 1
        %p194 = scmp.lt.s32.totalorder %s191, 15
        %s195 = scalar_select %p194, %s191, 15
        %s196 = smul.addr %s193, 16
        %s197 = sadd.s32 %s195, %s196
        %s198 = smul.addr %s197, 8
        %s199 = scalar_lea.vmem %s2, %s198
        %s200 = smul.u32 16, %s16
      $region28: #{tpu_custom_call.1} parent=15 // pred_fallthru
        _
    $region16: #{tpu_custom_call.1} parent=5 // pred_fallthru
      _
    %p201 = scmp.le.s32.totalorder 1, %s9
    %p202 = scmp.lt.s32.totalorder %s9, 3
    %p203 = pnand %p201, %p202
    %p204 = pneg %p203
    // Predicated region
    $region29: #{tpu_custom_call.1} parent=5 // pred_check
      _
    $region30: #{tpu_custom_call.1} parent=5 // pred_check_branch
      %206 = sbr.rel (%p203) target = $region32
    $region31: #{tpu_custom_call.1} parent=5 // pred_region
      %s207 = ssub.s32 %s9, 1
      %s208 = smul.u32 4, %s19
      %p209 = scmp.lt.s32.totalorder %s20, 1
      %s210 = scalar_select %p209, %s20, 1
      %p211 = scmp.lt.s32.totalorder %s208, 3
      %s212 = scalar_select %p211, %s208, 3
      %p213 = scmp.lt.s32.totalorder %s21, 0
      %s214 = scalar_select %p213, %s21, 0
      %s215 = sadd.s32 %s214, %s212
      %s216 = smul.addr %s210, 4
      %s217 = sadd.s32 %s215, %s216
      %s218 = smul.addr %s217, 8
      %s219 = scalar_lea.vmem %s0, %s218
      %p220 = pneg %p58
      %p221 = pneg %p55
      %s222 = smul.u32 16, %s21
      %p223 = scmp.lt.s32.totalorder %s20, 1
      %s224 = scalar_select %p223, %s20, 1
      %p225 = scmp.lt.s32.totalorder %s222, 15
      %s226 = scalar_select %p225, %s222, 15
      %s227 = smul.addr %s224, 16
      %s228 = sadd.s32 %s226, %s227
      %s229 = smul.addr %s228, 4
      %s230 = scalar_lea.vmem %s1, %s229
      %p231 = pneg %p86
      %p232 = pneg %p83
      %s233 = smul.u32 16, %s19
      %p234 = scmp.lt.s32.totalorder %s20, 1
      %s235 = scalar_select %p234, %s20, 1
      %p236 = scmp.lt.s32.totalorder %s233, 15
      %s237 = scalar_select %p236, %s233, 15
      %s238 = smul.addr %s235, 16
      %s239 = sadd.s32 %s237, %s238
      %s240 = smul.addr %s239, 8
      %s241 = scalar_lea.vmem %s2, %s240
      %p242 = pneg %p114
      %p243 = pneg %p111
      %p244 = pneg %p140
      %p245 = pneg %p137
      %s246 = smul.u32 16, %s19
      %p247 = scmp.lt.s32.totalorder %s246, 15
      %s248 = scalar_select %p247, %s246, 15
      %s249 = smul.addr %s248, 8
      %s250 = scalar_lea.vmem %s3, %s249
      %s251 = smul.u32 4, %s19
      %p252 = scmp.lt.s32.totalorder %s20, 1
      %s253 = scalar_select %p252, %s20, 1
      %p254 = scmp.lt.s32.totalorder %s251, 3
      %s255 = scalar_select %p254, %s251, 3
      %p256 = scmp.lt.s32.totalorder %s21, 0
      %s257 = scalar_select %p256, %s21, 0
      %s258 = sadd.s32 %s257, %s255
      %s259 = smul.addr %s253, 4
      %s260 = sadd.s32 %s258, %s259
      %s261 = smul.addr %s260, 8
      %s262 = scalar_lea.vmem %s0, %s261
      %s263 = smul.u32 4, %s19
      %s264 = smul.u32 16, %s21
      %p265 = scmp.lt.s32.totalorder %s20, 1
      %s266 = scalar_select %p265, %s20, 1
      %p267 = scmp.lt.s32.totalorder %s264, 15
      %s268 = scalar_select %p267, %s264, 15
      %s269 = smul.addr %s266, 16
      %s270 = sadd.s32 %s268, %s269
      %s271 = smul.addr %s270, 4
      %s272 = scalar_lea.vmem %s1, %s271
      %s273 = smul.u32 16, %s21
      %s274 = smul.u32 16, %s19
      %p275 = scmp.lt.s32.totalorder %s20, 1
      %s276 = scalar_select %p275, %s20, 1
      %p277 = scmp.lt.s32.totalorder %s274, 15
      %s278 = scalar_select %p277, %s274, 15
      %s279 = smul.addr %s276, 16
      %s280 = sadd.s32 %s278, %s279
      %s281 = smul.addr %s280, 8
      %s282 = scalar_lea.vmem %s2, %s281
      %s283 = smul.u32 16, %s19
      %s284 = smul.u32 16, %s19
      %p285 = scmp.lt.s32.totalorder %s284, 15
      %s286 = scalar_select %p285, %s284, 15
      %s287 = smul.addr %s286, 8
      %s288 = scalar_lea.vmem %s3, %s287
      %s289 = smul.u32 16, %s19
      %p291 = scmp.eq.s32.totalorder %s20, 0
      %p292 = scmp.eq.s32.totalorder %s21, 0
      %p293 = pnand %p291, %p292
      %p294 = pneg %p293
      // Predicated region
      $region33: #{tpu_custom_call.1} parent=31 // pred_check
        _
      $region34: #{tpu_custom_call.1} parent=31 // pred_check_branch
        %296 = sbr.rel (%p293) target = $region36
      $region35: #{tpu_custom_call.1} parent=31 // pred_region
        %vm297 = vcmask 261120
        %298 = vst.msk [vmem:[%s288] sm:$0xff] %vm297, 0.0
        %299 = vst.msk [vmem:[%s288 + $0x8] sm:$0xff] %vm297, 0.0
        %300 = vst.msk [vmem:[%s288 + $0x10] sm:$0xff] %vm297, 0.0
        %301 = vst.msk [vmem:[%s288 + $0x18] sm:$0xff] %vm297, 0.0
        %302 = vst.msk [vmem:[%s288 + $0x20] sm:$0xff] %vm297, 0.0
        %303 = vst.msk [vmem:[%s288 + $0x28] sm:$0xff] %vm297, 0.0
        %304 = vst.msk [vmem:[%s288 + $0x30] sm:$0xff] %vm297, 0.0
        %305 = vst.msk [vmem:[%s288 + $0x38] sm:$0xff] %vm297, 0.0
        %306 = vst.msk [vmem:[%s288 + $0x40] sm:$0xff] %vm297, 0.0
        %307 = vst.msk [vmem:[%s288 + $0x48] sm:$0xff] %vm297, 0.0
        %308 = vst.msk [vmem:[%s288 + $0x50] sm:$0xff] %vm297, 0.0
        %309 = vst.msk [vmem:[%s288 + $0x58] sm:$0xff] %vm297, 0.0
        %310 = vst.msk [vmem:[%s288 + $0x60] sm:$0xff] %vm297, 0.0
        %311 = vst.msk [vmem:[%s288 + $0x68] sm:$0xff] %vm297, 0.0
        %312 = vst.msk [vmem:[%s288 + $0x70] sm:$0xff] %vm297, 0.0
        %313 = vst.msk [vmem:[%s288 + $0x78] sm:$0xff] %vm297, 0.0
      $region36: #{tpu_custom_call.1} parent=31 // pred_fallthru
        _
      %v314 = vld [vmem:[%s262] sm:$0xff]
      %v315 = vld [vmem:[%s262 + $0x8] sm:$0xff]
      %v316 = vld [vmem:[%s262 + $0x10] sm:$0xff]
      %v317 = vld [vmem:[%s262 + $0x18] sm:$0xff]
      %v318 = vunpack.c.l.s8.bf16 %v314
      %v319 = vunpack.c.h.s8.bf16 %v314
      %v320 = vunpack.c.l.s8.bf16 %v315
      %v321 = vunpack.c.h.s8.bf16 %v315
      %v322 = vunpack.c.l.s8.bf16 %v316
      %v323 = vunpack.c.h.s8.bf16 %v316
      %v324 = vunpack.c.l.s8.bf16 %v317
      %v325 = vunpack.c.h.s8.bf16 %v317
      %v326 = vld [vmem:[%s272] sm:$0xf]
      %v327 = vld [vmem:[%s272 + $0x4] sm:$0xf]
      %v328 = vld [vmem:[%s272 + $0x8] sm:$0xf]
      %v329 = vld [vmem:[%s272 + $0xc] sm:$0xf]
      %v330 = vld [vmem:[%s272 + $0x10] sm:$0xf]
      %v331 = vld [vmem:[%s272 + $0x14] sm:$0xf]
      %v332 = vld [vmem:[%s272 + $0x18] sm:$0xf]
      %v333 = vld [vmem:[%s272 + $0x1c] sm:$0xf]
      %v334 = vld [vmem:[%s272 + $0x20] sm:$0xf]
      %v335 = vld [vmem:[%s272 + $0x24] sm:$0xf]
      %v336 = vld [vmem:[%s272 + $0x28] sm:$0xf]
      %v337 = vld [vmem:[%s272 + $0x2c] sm:$0xf]
      %v338 = vld [vmem:[%s272 + $0x30] sm:$0xf]
      %v339 = vld [vmem:[%s272 + $0x34] sm:$0xf]
      %v340 = vld [vmem:[%s272 + $0x38] sm:$0xf]
      %v341 = vld [vmem:[%s272 + $0x3c] sm:$0xf]
      %v358 = vunpack.c.l.b16 %v326
      %v359 = vunpack.c.l.b16 %v327
      %v360 = vunpack.c.l.b16 %v328
      %v361 = vunpack.c.l.b16 %v329
      %v362 = vunpack.c.l.b16 %v330
      %v363 = vunpack.c.l.b16 %v331
      %v364 = vunpack.c.l.b16 %v332
      %v365 = vunpack.c.l.b16 %v333
      %v366 = vunpack.c.l.b16 %v334
      %v367 = vunpack.c.l.b16 %v335
      %v368 = vunpack.c.l.b16 %v336
      %v369 = vunpack.c.l.b16 %v337
      %v370 = vunpack.c.l.b16 %v338
      %v371 = vunpack.c.l.b16 %v339
      %v372 = vunpack.c.l.b16 %v340
      %v373 = vunpack.c.l.b16 %v341
      %v374 = vpack.c.b16 %v359, %v358
      %v375 = vpack.c.b16 %v361, %v360
      %v376 = vpack.c.b16 %v363, %v362
      %v377 = vpack.c.b16 %v365, %v364
      %v378 = vpack.c.b16 %v367, %v366
      %v379 = vpack.c.b16 %v369, %v368
      %v380 = vpack.c.b16 %v371, %v370
      %v381 = vpack.c.b16 %v373, %v372
      %390 = vmatprep.subr.bf16.mxu0 0
      %391 = vmatpush1.bf16.msra.mxu0 %v381
      %392 = vmatprep.subr.bf16.mxu0 0
      %393 = vmatpush1.bf16.msra.mxu0 %v380
      %394 = vmatprep.subr.bf16.mxu0 0
      %395 = vmatpush1.bf16.msra.mxu0 %v379
      %396 = vmatprep.subr.bf16.mxu0 0
      %397 = vmatpush1.bf16.msra.mxu0 %v378
      %398 = vmatprep.subr.bf16.mxu0 0
      %399 = vmatpush1.bf16.msra.mxu0 %v377
      %400 = vmatprep.subr.bf16.mxu0 0
      %401 = vmatpush1.bf16.msra.mxu0 %v376
      %402 = vmatprep.subr.bf16.mxu0 0
      %403 = vmatpush1.bf16.msra.mxu0 %v375
      %404 = vmatprep.subr.bf16.mxu0 0
      %405 = vmatpush1.bf16.msra.mxu0 %v374
      %406 = vmatprep.subr.bf16.mxu0 0
      %407 = vmatpush2.bf16.msra.mxu0 0
      %408 = vmatprep.subr.bf16.mxu0 0
      %409 = vmatpush2.bf16.msra.mxu0 0
      %410 = vmatprep.subr.bf16.mxu0 0
      %411 = vmatpush2.bf16.msra.mxu0 0
      %412 = vmatprep.subr.bf16.mxu0 0
      %413 = vmatpush2.bf16.msra.mxu0 0
      %414 = vmatprep.subr.bf16.mxu0 0
      %415 = vmatpush2.bf16.msra.mxu0 0
      %416 = vmatprep.subr.bf16.mxu0 0
      %417 = vmatpush2.bf16.msra.mxu0 0
      %418 = vmatprep.subr.bf16.mxu0 0
      %419 = vmatpush2.bf16.msra.mxu0 0
      %420 = vmatprep.subr.bf16.mxu0 0
      %421 = vmatpush2.bf16.msra.mxu0 0
      %422 = vmatprep.mubr.bf16.mxu0 0
      %423 = vmatmul.mubr.bf16.gmra.mxu0 %v318
      %v424 = vpop.f32.mrf.mxu0
      %v425 = vadd.f32 0.0, %v424
      %v426 = vpop.f32.mrf.mxu0
      %v427 = vpop.f32.mrf.mxu0
      %v428 = vadd.f32 0.0, %v427
      %v429 = vpop.f32.mrf.mxu0
      %430 = vmatprep.mubr.bf16.mxu0 0
      %431 = vmatmul.mubr.bf16.gmra.mxu0 %v319
      %v432 = vpop.f32.mrf.mxu0
      %v433 = vadd.f32 0.0, %v432
      %v434 = vpop.f32.mrf.mxu0
      %v435 = vpop.f32.mrf.mxu0
      %v436 = vadd.f32 0.0, %v435
      %v437 = vpop.f32.mrf.mxu0
      %438 = vmatprep.mubr.bf16.mxu0 0
      %439 = vmatmul.mubr.bf16.gmra.mxu0 %v320
      %v440 = vpop.f32.mrf.mxu0
      %v441 = vadd.f32 0.0, %v440
      %v442 = vpop.f32.mrf.mxu0
      %v443 = vpop.f32.mrf.mxu0
      %v444 = vadd.f32 0.0, %v443
      %v445 = vpop.f32.mrf.mxu0
      %446 = vmatprep.mubr.bf16.mxu0 0
      %447 = vmatmul.mubr.bf16.gmra.mxu0 %v321
      %v448 = vpop.f32.mrf.mxu0
      %v449 = vadd.f32 0.0, %v448
      %v450 = vpop.f32.mrf.mxu0
      %v451 = vpop.f32.mrf.mxu0
      %v452 = vadd.f32 0.0, %v451
      %v453 = vpop.f32.mrf.mxu0
      %454 = vmatprep.mubr.bf16.mxu0 0
      %455 = vmatmul.mubr.bf16.gmra.mxu0 %v322
      %v456 = vpop.f32.mrf.mxu0
      %v457 = vadd.f32 0.0, %v456
      %v458 = vpop.f32.mrf.mxu0
      %v459 = vpop.f32.mrf.mxu0
      %v460 = vadd.f32 0.0, %v459
      %v461 = vpop.f32.mrf.mxu0
      %462 = vmatprep.mubr.bf16.mxu0 0
      %463 = vmatmul.mubr.bf16.gmra.mxu0 %v323
      %v464 = vpop.f32.mrf.mxu0
      %v465 = vadd.f32 0.0, %v464
      %v466 = vpop.f32.mrf.mxu0
      %v467 = vpop.f32.mrf.mxu0
      %v468 = vadd.f32 0.0, %v467
      %v469 = vpop.f32.mrf.mxu0
      %470 = vmatprep.mubr.bf16.mxu0 0
      %471 = vmatmul.mubr.bf16.gmra.mxu0 %v324
      %v472 = vpop.f32.mrf.mxu0
      %v473 = vadd.f32 0.0, %v472
      %v474 = vpop.f32.mrf.mxu0
      %v475 = vpop.f32.mrf.mxu0
      %v476 = vadd.f32 0.0, %v475
      %v477 = vpop.f32.mrf.mxu0
      %478 = vmatprep.mubr.bf16.mxu0 0
      %479 = vmatmul.mubr.bf16.gmra.mxu0 %v325
      %v480 = vpop.f32.mrf.mxu0
      %v481 = vadd.f32 0.0, %v480
      %v482 = vpop.f32.mrf.mxu0
      %v483 = vpop.f32.mrf.mxu0
      %v484 = vadd.f32 0.0, %v483
      %v485 = vpop.f32.mrf.mxu0
      %486 = vdwg.mxu0
      %v487 = vld [vmem:[%s288] sm:$0xff]
      %v488 = vld [vmem:[%s288 + $0x8] sm:$0xff]
      %v489 = vld [vmem:[%s288 + $0x10] sm:$0xff]
      %v490 = vld [vmem:[%s288 + $0x18] sm:$0xff]
      %v491 = vld [vmem:[%s288 + $0x20] sm:$0xff]
      %v492 = vld [vmem:[%s288 + $0x28] sm:$0xff]
      %v493 = vld [vmem:[%s288 + $0x30] sm:$0xff]
      %v494 = vld [vmem:[%s288 + $0x38] sm:$0xff]
      %v495 = vld [vmem:[%s288 + $0x40] sm:$0xff]
      %v496 = vld [vmem:[%s288 + $0x48] sm:$0xff]
      %v497 = vld [vmem:[%s288 + $0x50] sm:$0xff]
      %v498 = vld [vmem:[%s288 + $0x58] sm:$0xff]
      %v499 = vld [vmem:[%s288 + $0x60] sm:$0xff]
      %v500 = vld [vmem:[%s288 + $0x68] sm:$0xff]
      %v501 = vld [vmem:[%s288 + $0x70] sm:$0xff]
      %v502 = vld [vmem:[%s288 + $0x78] sm:$0xff]
      %v503 = vld [vmem:[%s282] sm:$0xff]
      %v504 = vld [vmem:[%s282 + $0x8] sm:$0xff]
      %v505 = vld [vmem:[%s282 + $0x10] sm:$0xff]
      %v506 = vld [vmem:[%s282 + $0x18] sm:$0xff]
      %v507 = vld [vmem:[%s282 + $0x20] sm:$0xff]
      %v508 = vld [vmem:[%s282 + $0x28] sm:$0xff]
      %v509 = vld [vmem:[%s282 + $0x30] sm:$0xff]
      %v510 = vld [vmem:[%s282 + $0x38] sm:$0xff]
      %v511 = vld [vmem:[%s282 + $0x40] sm:$0xff]
      %v512 = vld [vmem:[%s282 + $0x48] sm:$0xff]
      %v513 = vld [vmem:[%s282 + $0x50] sm:$0xff]
      %v514 = vld [vmem:[%s282 + $0x58] sm:$0xff]
      %v515 = vld [vmem:[%s282 + $0x60] sm:$0xff]
      %v516 = vld [vmem:[%s282 + $0x68] sm:$0xff]
      %v517 = vld [vmem:[%s282 + $0x70] sm:$0xff]
      %v518 = vld [vmem:[%s282 + $0x78] sm:$0xff]
      %520 = vset.pattern.permute.xlu0 0
      %521 = vperm.xlu0 %520, %v503
      %v522 = vpop.permute.xlu0 %521
      %525 = vset.pattern.permute.xlu0 0
      %526 = vperm.xlu0 %525, %v504
      %v527 = vpop.permute.xlu0 %526
      %530 = vset.pattern.permute.xlu0 0
      %531 = vperm.xlu0 %530, %v505
      %v532 = vpop.permute.xlu0 %531
      %535 = vset.pattern.permute.xlu0 0
      %536 = vperm.xlu0 %535, %v506
      %v537 = vpop.permute.xlu0 %536
      %540 = vset.pattern.permute.xlu0 0
      %541 = vperm.xlu0 %540, %v507
      %v542 = vpop.permute.xlu0 %541
      %545 = vset.pattern.permute.xlu0 0
      %546 = vperm.xlu0 %545, %v508
      %v547 = vpop.permute.xlu0 %546
      %550 = vset.pattern.permute.xlu0 0
      %551 = vperm.xlu0 %550, %v509
      %v552 = vpop.permute.xlu0 %551
      %555 = vset.pattern.permute.xlu0 0
      %556 = vperm.xlu0 %555, %v510
      %v557 = vpop.permute.xlu0 %556
      %560 = vset.pattern.permute.xlu0 0
      %561 = vperm.xlu0 %560, %v511
      %v562 = vpop.permute.xlu0 %561
      %565 = vset.pattern.permute.xlu0 0
      %566 = vperm.xlu0 %565, %v512
      %v567 = vpop.permute.xlu0 %566
      %570 = vset.pattern.permute.xlu0 0
      %571 = vperm.xlu0 %570, %v513
      %v572 = vpop.permute.xlu0 %571
      %575 = vset.pattern.permute.xlu0 0
      %576 = vperm.xlu0 %575, %v514
      %v577 = vpop.permute.xlu0 %576
      %580 = vset.pattern.permute.xlu0 0
      %581 = vperm.xlu0 %580, %v515
      %v582 = vpop.permute.xlu0 %581
      %585 = vset.pattern.permute.xlu0 0
      %586 = vperm.xlu0 %585, %v516
      %v587 = vpop.permute.xlu0 %586
      %590 = vset.pattern.permute.xlu0 0
      %591 = vperm.xlu0 %590, %v517
      %v592 = vpop.permute.xlu0 %591
      %595 = vset.pattern.permute.xlu0 0
      %596 = vperm.xlu0 %595, %v518
      %v597 = vpop.permute.xlu0 %596
      %v599 = vmul.f32 %v522, %v425
      %v600 = vmul.f32 %v527, %v428
      %v601 = vmul.f32 %v532, %v433
      %v602 = vmul.f32 %v537, %v436
      %v603 = vmul.f32 %v542, %v441
      %v604 = vmul.f32 %v547, %v444
      %v605 = vmul.f32 %v552, %v449
      %v606 = vmul.f32 %v557, %v452
      %v607 = vmul.f32 %v562, %v457
      %v608 = vmul.f32 %v567, %v460
      %v609 = vmul.f32 %v572, %v465
      %v610 = vmul.f32 %v577, %v468
      %v611 = vmul.f32 %v582, %v473
      %v612 = vmul.f32 %v587, %v476
      %v613 = vmul.f32 %v592, %v481
      %v614 = vmul.f32 %v597, %v484
      %v615 = vadd.f32 %v487, %v599
      %v616 = vadd.f32 %v488, %v600
      %v617 = vadd.f32 %v489, %v601
      %v618 = vadd.f32 %v490, %v602
      %v619 = vadd.f32 %v491, %v603
      %v620 = vadd.f32 %v492, %v604
      %v621 = vadd.f32 %v493, %v605
      %v622 = vadd.f32 %v494, %v606
      %v623 = vadd.f32 %v495, %v607
      %v624 = vadd.f32 %v496, %v608
      %v625 = vadd.f32 %v497, %v609
      %v626 = vadd.f32 %v498, %v610
      %v627 = vadd.f32 %v499, %v611
      %v628 = vadd.f32 %v500, %v612
      %v629 = vadd.f32 %v501, %v613
      %v630 = vadd.f32 %v502, %v614
      %vm631 = vcmask 261120
      %632 = vst.msk [vmem:[%s288] sm:$0xff] %vm631, %v615
      %633 = vst.msk [vmem:[%s288 + $0x8] sm:$0xff] %vm631, %v616
      %634 = vst.msk [vmem:[%s288 + $0x10] sm:$0xff] %vm631, %v617
      %635 = vst.msk [vmem:[%s288 + $0x18] sm:$0xff] %vm631, %v618
      %636 = vst.msk [vmem:[%s288 + $0x20] sm:$0xff] %vm631, %v619
      %637 = vst.msk [vmem:[%s288 + $0x28] sm:$0xff] %vm631, %v620
      %638 = vst.msk [vmem:[%s288 + $0x30] sm:$0xff] %vm631, %v621
      %639 = vst.msk [vmem:[%s288 + $0x38] sm:$0xff] %vm631, %v622
      %640 = vst.msk [vmem:[%s288 + $0x40] sm:$0xff] %vm631, %v623
      %641 = vst.msk [vmem:[%s288 + $0x48] sm:$0xff] %vm631, %v624
      %642 = vst.msk [vmem:[%s288 + $0x50] sm:$0xff] %vm631, %v625
      %643 = vst.msk [vmem:[%s288 + $0x58] sm:$0xff] %vm631, %v626
      %644 = vst.msk [vmem:[%s288 + $0x60] sm:$0xff] %vm631, %v627
      %645 = vst.msk [vmem:[%s288 + $0x68] sm:$0xff] %vm631, %v628
      %646 = vst.msk [vmem:[%s288 + $0x70] sm:$0xff] %vm631, %v629
      %647 = vst.msk [vmem:[%s288 + $0x78] sm:$0xff] %vm631, %v630
      %s648 = smul.u32 16, %s19
      %p649 = scmp.lt.s32.totalorder %s648, 15
      %s650 = scalar_select %p649, %s648, 15
      %s651 = smul.addr %s650, 8
      %s652 = scalar_lea.vmem %s3, %s651
      // Predicated region
      $region37: #{tpu_custom_call.1} parent=31 // pred_check
        %p653 = pneg %p137
      $region38: #{tpu_custom_call.1} parent=31 // pred_check_branch
        %655 = sbr.rel (%p653) target = $region40
      $region39: #{tpu_custom_call.1} parent=31 // pred_region
        %s656 = smul.u32 16, %s19
      $region40: #{tpu_custom_call.1} parent=31 // pred_fallthru
        _
      // Predicated region
      $region41: #{tpu_custom_call.1} parent=31 // pred_check
        %p657 = pneg %p137
      $region42: #{tpu_custom_call.1} parent=31 // pred_check_branch
        %659 = sbr.rel (%p657) target = $region44
      $region43: #{tpu_custom_call.1} parent=31 // pred_region
        %s660 = smul.u32 16, %s19
        %p661 = scmp.lt.s32.totalorder %s660, 15
        %s662 = scalar_select %p661, %s660, 15
        %s663 = smul.addr %s662, 8
        %s664 = scalar_lea.vmem %s3, %s663
      $region44: #{tpu_custom_call.1} parent=31 // pred_fallthru
        _
    $region32: #{tpu_custom_call.1} parent=5 // pred_fallthru
      _
    %p665 = scmp.le.s32.totalorder 2, %s9
    // Predicated region
    $region45: #{tpu_custom_call.1} parent=5 // pred_check
      %p666 = pneg %p665
    $region46: #{tpu_custom_call.1} parent=5 // pred_check_branch
      %668 = sbr.rel (%p666) target = $region48
    $region47: #{tpu_custom_call.1} parent=5 // pred_region
      %s669 = ssub.s32 %s9, 2
    $region48: #{tpu_custom_call.1} parent=5 // pred_fallthru
      _
  $region6: #{tpu_custom_call.1} parent=0 // loop_footer
    %s13 = sadd.s32 1, %s9
  $region7: #{tpu_custom_call.1} parent=0 // loop_footer_branch
    %8 = sbr.rel target = $region3
  $region8: #{tpu_custom_call.1} parent=0 // loop_exit
    _

</llo_original>
